<compile_context>
chip_gen: v7x
topology: tpu7x:2x2x1
jax: 0.10.0
libtpu: 0.0.40
codegen_flags: <defaults>
</compile_context>

<pallas_src>
import jax
import jax.numpy as jnp
from jax.experimental import pallas as pl
from jax.experimental.pallas import tpu as pltpu

F_IN = 2            # real input features (kept unpadded: 8 B/row DMA)
H = 16              # hidden width 10 padded to 16 sublanes
H3 = 8              # fc3 output width 3 padded to 8 sublanes
TILE_N_MAX = 8192   # batch columns per grid step (multiple of 128)


def _mlp_kernel(x_ref, w1_ref, b1_ref, w2_ref, b2_ref,
                w3_ref, b3_ref, w4_ref, b4_ref, o_ref):
    x = x_ref[...]                                  # (2, T)
    w1 = w1_ref[...]                                # (H, 2)

    # Layer 1 (fc1 + relu): K=2 -> 2-term broadcast FMA instead of a tiny matmul.
    h1 = (w1[:, 0:1] * x[0:1, :]
          + w1[:, 1:2] * x[1:2, :]
          + b1_ref[...])                            # (H, T)
    h1 = jnp.maximum(h1, 0.0)

    # Layer 2 (fc2 + relu): MXU dot, K = H = 16.
    h2 = jnp.dot(w2_ref[...], h1,
                 preferred_element_type=jnp.float32) + b2_ref[...]   # (H, T)
    h2 = jnp.maximum(h2, 0.0)

    # Layer 3 (fc3 + relu): MXU dot, M = 8.
    h3 = jnp.dot(w3_ref[...], h2,
                 preferred_element_type=jnp.float32) + b3_ref[...]   # (H3, T)
    h3 = jnp.maximum(h3, 0.0)

    # Layer 4 (fc4 + sigmoid): single output row -> multiply + sublane reduce.
    z4 = jnp.sum(w4_ref[...] * h3, axis=0, keepdims=True) + b4_ref[...]  # (1, T)
    o_ref[...] = jax.nn.sigmoid(z4)


def _round_up(a, m):
    return (a + m - 1) // m * m


def _pad2d(a, rows, cols):
    r, c = a.shape
    return jnp.pad(a, ((0, rows - r), (0, cols - c)))


def simple_nn3d_forward(x, params, tile_n_max=TILE_N_MAX):
    """x: (N, 2) float32.  params: dict name -> (W, b), W in (in, out) layout."""
    n, f = x.shape
    assert f == F_IN

    n128 = _round_up(max(n, 1), 128)
    tile_n = min(tile_n_max, n128)          # multiple of 128 by construction
    n_pad = _round_up(n, tile_n)
    grid_n = n_pad // tile_n

    (w1, b1), (w2, b2), (w3, b3), (w4, b4) = (
        params["fc1"], params["fc2"], params["fc3"], params["fc4"])

    # Feature-major operands.  Weights are (out, in) = W.T of the (in, out)
    # storage so the kernel computes h_t = W.T @ x_t (+ b) on the MXU.
    x_t = _pad2d(x.T, F_IN, n_pad)           # (2, n_pad)
    w1_t = _pad2d(w1.T, H, F_IN)             # (16, 2)
    w2_t = _pad2d(w2.T, H, H)                # (16, 16)
    w3_t = _pad2d(w3.T, H3, H)               # (8, 16)
    w4_c = _pad2d(w4, H3, 1)                 # (8, 1)  column of fc4 weights
    b1_c = _pad2d(b1.reshape(-1, 1), H, 1)   # (16, 1)
    b2_c = _pad2d(b2.reshape(-1, 1), H, 1)   # (16, 1)
    b3_c = _pad2d(b3.reshape(-1, 1), H3, 1)  # (8, 1)
    b4_s = b4.reshape(1, 1)                  # (1, 1)

    # Weights/biases: same (0, 0) block every batch step -> stay VMEM-resident.
    pinned = lambda shape: pl.BlockSpec(shape, lambda i: (0, 0))

    out = pl.pallas_call(
        _mlp_kernel,
        out_shape=jax.ShapeDtypeStruct((1, n_pad), jnp.float32),
        grid=(grid_n,),
        in_specs=[
            pl.BlockSpec((F_IN, tile_n), lambda i: (0, i)),  # x: tiled over batch lanes
            pinned((H, F_IN)),    # w1
            pinned((H, 1)),       # b1
            pinned((H, H)),       # w2
            pinned((H, 1)),       # b2
            pinned((H3, H)),      # w3
            pinned((H3, 1)),      # b3
            pinned((H3, 1)),      # w4
            pinned((1, 1)),       # b4
        ],
        out_specs=pl.BlockSpec((1, tile_n), lambda i: (0, i)),
        compiler_params=pltpu.CompilerParams(
            dimension_semantics=("parallel",)),
    )(x_t, w1_t, b1_c, w2_t, b2_c, w3_t, b3_c, w4_c, b4_s)

    return out[:, :n].T                      # (n, 1)


def init_params(key):
    """Deterministic PyTorch-style init: U(-1/sqrt(fan_in), 1/sqrt(fan_in))."""
    dims = [("fc1", 2, 10), ("fc2", 10, 10), ("fc3", 10, 3), ("fc4", 3, 1)]
    params = {}
    for name, fan_in, fan_out in dims:
        key, kw, kb = jax.random.split(key, 3)
        bound = 1.0 / jnp.sqrt(float(fan_in))
        w = jax.random.uniform(kw, (fan_in, fan_out), jnp.float32, -bound, bound)
        b = jax.random.uniform(kb, (fan_out,), jnp.float32, -bound, bound)
        params[name] = (w, b)
    return params


def reference_forward(x, params):
    h = x
    for name in ("fc1", "fc2", "fc3"):
        w, b = params[name]
        h = jnp.maximum(h @ w + b, 0.0)
    w, b = params["fc4"]
    return jax.nn.sigmoid(h @ w + b)


if __name__ == "__main__":
    key = jax.random.PRNGKey(0)
    key, kx, kx2 = jax.random.split(key, 3)
    params = init_params(key)

    # Small batch (single grid step, batch padded to 128 lanes).
    x = jax.random.normal(kx, (64, 2), dtype=jnp.float32)
    y = jax.block_until_ready(simple_nn3d_forward(x, params))
    y_ref = reference_forward(x, params)
    assert y.shape == (64, 1)
    assert jnp.allclose(y, y_ref, atol=1e-5, rtol=1e-5)

    # Non-multiple-of-tile batch with a small tile to exercise the batch grid
    # (4 grid steps) plus padding.
    x2 = jax.random.normal(kx2, (1000, 2), dtype=jnp.float32)
    y2 = jax.block_until_ready(simple_nn3d_forward(x2, params, tile_n_max=256))
    y2_ref = reference_forward(x2, params)
    assert y2.shape == (1000, 1)
    assert jnp.allclose(y2, y2_ref, atol=1e-5, rtol=1e-5)

    print("KERNEL_OK")
</pallas_src>

<mosaic_0001>
module attributes {stable_mosaic.version = 11 : i64} {
  func.func @_mlp_kernel(%arg0: i32, %arg1: memref<2x128xf32, #tpu.memory_space<vmem>>, %arg2: memref<16x2xf32, #tpu.memory_space<vmem>>, %arg3: memref<16x1xf32, #tpu.memory_space<vmem>>, %arg4: memref<16x16xf32, #tpu.memory_space<vmem>>, %arg5: memref<16x1xf32, #tpu.memory_space<vmem>>, %arg6: memref<8x16xf32, #tpu.memory_space<vmem>>, %arg7: memref<8x1xf32, #tpu.memory_space<vmem>>, %arg8: memref<8x1xf32, #tpu.memory_space<vmem>>, %arg9: memref<1x1xf32, #tpu.memory_space<vmem>>, %arg10: memref<1x128xf32, #tpu.memory_space<vmem>>) attributes {dimension_semantics = [#tpu.dimension_semantics<parallel>], iteration_bounds = array<i64: 1>, scalar_prefetch = 0 : i64, scratch_operands = 0 : i64, tpu.core_type = #tpu.core_type<tc>, window_params = [{transform_indices = @transform_0, window_bounds = array<i64: 2, 128>}, {pipeline_mode = #tpu.pipeline_mode<synchronous>, transform_indices = @transform_1, window_bounds = array<i64: 16, 2>}, {pipeline_mode = #tpu.pipeline_mode<synchronous>, transform_indices = @transform_2, window_bounds = array<i64: 16, 1>}, {pipeline_mode = #tpu.pipeline_mode<synchronous>, transform_indices = @transform_3, window_bounds = array<i64: 16, 16>}, {pipeline_mode = #tpu.pipeline_mode<synchronous>, transform_indices = @transform_4, window_bounds = array<i64: 16, 1>}, {pipeline_mode = #tpu.pipeline_mode<synchronous>, transform_indices = @transform_5, window_bounds = array<i64: 8, 16>}, {pipeline_mode = #tpu.pipeline_mode<synchronous>, transform_indices = @transform_6, window_bounds = array<i64: 8, 1>}, {pipeline_mode = #tpu.pipeline_mode<synchronous>, transform_indices = @transform_7, window_bounds = array<i64: 8, 1>}, {pipeline_mode = #tpu.pipeline_mode<synchronous>, transform_indices = @transform_8, window_bounds = array<i64: 1, 1>}, {transform_indices = @transform_9, window_bounds = array<i64: 1, 128>}]} {
    %c0 = arith.constant 0 : index
    %c0_0 = arith.constant 0 : index
    %0 = vector.load %arg1[%c0, %c0_0] : memref<2x128xf32, #tpu.memory_space<vmem>>, vector<2x128xf32>
    %c0_1 = arith.constant 0 : index
    %c0_2 = arith.constant 0 : index
    %1 = vector.load %arg2[%c0_1, %c0_2] : memref<16x2xf32, #tpu.memory_space<vmem>>, vector<16x2xf32>
    %2 = vector.extract_strided_slice %1 {offsets = [0, 0], sizes = [16, 1], strides = [1, 1]} : vector<16x2xf32> to vector<16x1xf32>
    %3 = vector.extract_strided_slice %0 {offsets = [0, 0], sizes = [1, 128], strides = [1, 1]} : vector<2x128xf32> to vector<1x128xf32>
    %4 = vector.broadcast %2 : vector<16x1xf32> to vector<16x128xf32>
    %5 = vector.broadcast %3 : vector<1x128xf32> to vector<16x128xf32>
    %6 = arith.mulf %4, %5 : vector<16x128xf32>
    %7 = vector.extract_strided_slice %1 {offsets = [0, 1], sizes = [16, 1], strides = [1, 1]} : vector<16x2xf32> to vector<16x1xf32>
    %8 = vector.extract_strided_slice %0 {offsets = [1, 0], sizes = [1, 128], strides = [1, 1]} : vector<2x128xf32> to vector<1x128xf32>
    %9 = vector.broadcast %7 : vector<16x1xf32> to vector<16x128xf32>
    %10 = vector.broadcast %8 : vector<1x128xf32> to vector<16x128xf32>
    %11 = arith.mulf %9, %10 : vector<16x128xf32>
    %12 = arith.addf %6, %11 : vector<16x128xf32>
    %c0_3 = arith.constant 0 : index
    %c0_4 = arith.constant 0 : index
    %13 = vector.load %arg3[%c0_3, %c0_4] : memref<16x1xf32, #tpu.memory_space<vmem>>, vector<16x1xf32>
    %14 = vector.broadcast %13 : vector<16x1xf32> to vector<16x128xf32>
    %15 = arith.addf %12, %14 : vector<16x128xf32>
    %cst = arith.constant 0.000000e+00 : f32
    %16 = vector.broadcast %cst : f32 to vector<16x128xf32>
    %17 = arith.maximumf %15, %16 : vector<16x128xf32>
    %c0_5 = arith.constant 0 : index
    %c0_6 = arith.constant 0 : index
    %18 = vector.load %arg4[%c0_5, %c0_6] : memref<16x16xf32, #tpu.memory_space<vmem>>, vector<16x16xf32>
    %cst_7 = arith.constant dense<0.000000e+00> : vector<16x128xf32>
    %19 = tpu.matmul %18, %17, %cst_7 {dimension_numbers = #tpu.dot_dimension_numbers<[1], [0], [0], [1], [0, 0, 1, 1], [], []>} : vector<16x16xf32>, vector<16x128xf32>, vector<16x128xf32> -> vector<16x128xf32>
    %c0_8 = arith.constant 0 : index
    %c0_9 = arith.constant 0 : index
    %20 = vector.load %arg5[%c0_8, %c0_9] : memref<16x1xf32, #tpu.memory_space<vmem>>, vector<16x1xf32>
    %21 = vector.broadcast %20 : vector<16x1xf32> to vector<16x128xf32>
    %22 = arith.addf %19, %21 : vector<16x128xf32>
    %cst_10 = arith.constant 0.000000e+00 : f32
    %23 = vector.broadcast %cst_10 : f32 to vector<16x128xf32>
    %24 = arith.maximumf %22, %23 : vector<16x128xf32>
    %c0_11 = arith.constant 0 : index
    %c0_12 = arith.constant 0 : index
    %25 = vector.load %arg6[%c0_11, %c0_12] : memref<8x16xf32, #tpu.memory_space<vmem>>, vector<8x16xf32>
    %cst_13 = arith.constant dense<0.000000e+00> : vector<8x128xf32>
    %26 = tpu.matmul %25, %24, %cst_13 {dimension_numbers = #tpu.dot_dimension_numbers<[1], [0], [0], [1], [0, 0, 1, 1], [], []>} : vector<8x16xf32>, vector<16x128xf32>, vector<8x128xf32> -> vector<8x128xf32>
    %c0_14 = arith.constant 0 : index
    %c0_15 = arith.constant 0 : index
    %27 = vector.load %arg7[%c0_14, %c0_15] : memref<8x1xf32, #tpu.memory_space<vmem>>, vector<8x1xf32>
    %28 = vector.broadcast %27 : vector<8x1xf32> to vector<8x128xf32>
    %29 = arith.addf %26, %28 : vector<8x128xf32>
    %cst_16 = arith.constant 0.000000e+00 : f32
    %30 = vector.broadcast %cst_16 : f32 to vector<8x128xf32>
    %31 = arith.maximumf %29, %30 : vector<8x128xf32>
    %c0_17 = arith.constant 0 : index
    %c0_18 = arith.constant 0 : index
    %32 = vector.load %arg8[%c0_17, %c0_18] : memref<8x1xf32, #tpu.memory_space<vmem>>, vector<8x1xf32>
    %33 = vector.broadcast %32 : vector<8x1xf32> to vector<8x128xf32>
    %34 = arith.mulf %33, %31 : vector<8x128xf32>
    %cst_19 = arith.constant dense<0.000000e+00> : vector<128xf32>
    %35 = vector.multi_reduction <add>, %34, %cst_19 [0] : vector<8x128xf32> to vector<128xf32>
    %36 = vector.shape_cast %35 : vector<128xf32> to vector<1x128xf32>
    %c0_20 = arith.constant 0 : index
    %c0_21 = arith.constant 0 : index
    %37 = vector.load %arg9[%c0_20, %c0_21] : memref<1x1xf32, #tpu.memory_space<vmem>>, vector<1x1xf32>
    %38 = vector.broadcast %37 : vector<1x1xf32> to vector<1x128xf32>
    %39 = arith.addf %36, %38 : vector<1x128xf32>
    %40 = arith.negf %39 : vector<1x128xf32>
    %41 = math.exp %40 : vector<1x128xf32>
    %cst_22 = arith.constant 1.000000e+00 : f32
    %42 = vector.broadcast %cst_22 : f32 to vector<1x128xf32>
    %43 = arith.addf %42, %41 : vector<1x128xf32>
    %44 = arith.divf %42, %43 : vector<1x128xf32>
    %c0_23 = arith.constant 0 : index
    %c0_24 = arith.constant 0 : index
    %45 = vector.load %arg10[%c0_23, %c0_24] : memref<1x128xf32, #tpu.memory_space<vmem>>, vector<1x128xf32>
    tpu.vector_store %arg10[%c0_23, %c0_24], %44 {strides = array<i32>} : memref<1x128xf32, #tpu.memory_space<vmem>>, vector<1x128xf32>,
    return
  }
  func.func @transform_0(%arg0: i32) -> (i32, i32) {
    %c0_i32 = arith.constant 0 : i32
    %c0_i32_0 = arith.constant 0 : i32
    return %c0_i32, %arg0 : i32, i32
  }
  func.func @transform_1(%arg0: i32) -> (i32, i32) {
    %c0_i32 = arith.constant 0 : i32
    %c0_i32_0 = arith.constant 0 : i32
    %c0_i32_1 = arith.constant 0 : i32
    return %c0_i32, %c0_i32_0 : i32, i32
  }
  func.func @transform_2(%arg0: i32) -> (i32, i32) {
    %c0_i32 = arith.constant 0 : i32
    %c0_i32_0 = arith.constant 0 : i32
    %c0_i32_1 = arith.constant 0 : i32
    return %c0_i32, %c0_i32_0 : i32, i32
  }
  func.func @transform_3(%arg0: i32) -> (i32, i32) {
    %c0_i32 = arith.constant 0 : i32
    %c0_i32_0 = arith.constant 0 : i32
    %c0_i32_1 = arith.constant 0 : i32
    return %c0_i32, %c0_i32_0 : i32, i32
  }
  func.func @transform_4(%arg0: i32) -> (i32, i32) {
    %c0_i32 = arith.constant 0 : i32
    %c0_i32_0 = arith.constant 0 : i32
    %c0_i32_1 = arith.constant 0 : i32
    return %c0_i32, %c0_i32_0 : i32, i32
  }
  func.func @transform_5(%arg0: i32) -> (i32, i32) {
    %c0_i32 = arith.constant 0 : i32
    %c0_i32_0 = arith.constant 0 : i32
    %c0_i32_1 = arith.constant 0 : i32
    return %c0_i32, %c0_i32_0 : i32, i32
  }
  func.func @transform_6(%arg0: i32) -> (i32, i32) {
    %c0_i32 = arith.constant 0 : i32
    %c0_i32_0 = arith.constant 0 : i32
    %c0_i32_1 = arith.constant 0 : i32
    return %c0_i32, %c0_i32_0 : i32, i32
  }
  func.func @transform_7(%arg0: i32) -> (i32, i32) {
    %c0_i32 = arith.constant 0 : i32
    %c0_i32_0 = arith.constant 0 : i32
    %c0_i32_1 = arith.constant 0 : i32
    return %c0_i32, %c0_i32_0 : i32, i32
  }
  func.func @transform_8(%arg0: i32) -> (i32, i32) {
    %c0_i32 = arith.constant 0 : i32
    %c0_i32_0 = arith.constant 0 : i32
    %c0_i32_1 = arith.constant 0 : i32
    return %c0_i32, %c0_i32_0 : i32, i32
  }
  func.func @transform_9(%arg0: i32) -> (i32, i32) {
    %c0_i32 = arith.constant 0 : i32
    %c0_i32_0 = arith.constant 0 : i32
    return %c0_i32, %arg0 : i32, i32
  }
}

</mosaic_0001>

<llo_original>
// kernel: tpu_custom_call.1
$region0: #{tpu_custom_call.1}
  #allocation0 [shape = 'u32[]', space=smem, size = 0x4, offset = 0x4, fixed_abs, tag = 'smem constant byte address 0x4 - core index']
  #allocation1 [shape = 'u32[144,128]{1,0:T(1,128)}', space=vmem, size = 0x12000, scoped, tag = 'internal scratch']
  #allocation2 [shape = 'f32[1,1]{1,0:T(1,128)S(1)}', space=vmem, size = 0x200, scoped, tag = 'scoped memory for tpu_custom_call.1']
  %s0 = inlined_call_operand.vmem [shape: f32[2,128], index: 0, kind: input, shape index: {}]
  %s1 = inlined_call_operand.vmem [shape: f32[16,2], index: 1, kind: input, shape index: {}]
  %s2 = inlined_call_operand.vmem [shape: f32[16,1], index: 2, kind: input, shape index: {}]
  %s3 = inlined_call_operand.vmem [shape: f32[16,16], index: 3, kind: input, shape index: {}]
  %s4 = inlined_call_operand.vmem [shape: f32[16,1], index: 4, kind: input, shape index: {}]
  %s5 = inlined_call_operand.vmem [shape: f32[8,16], index: 5, kind: input, shape index: {}]
  %s6 = inlined_call_operand.vmem [shape: f32[8,1], index: 6, kind: input, shape index: {}]
  %s7 = inlined_call_operand.vmem [shape: f32[8,1], index: 7, kind: input, shape index: {}]
  %s8 = inlined_call_operand.<no memory space> [shape: f32[1,1], index: 8, kind: input, shape index: {}]
  %s9 = inlined_call_operand.hbm [shape: f32[1,128], index: 9, kind: output, shape index: {}]
  %s10 = sld [smem:[#allocation0]]
  $region46: #{tpu_custom_call.1} parent=0
    _
  %s12 = ssub.s32 1, %s10
  %s13 = scalar_select 0, %s12, %s10
  %v14 = vstv %s8
  %15 = vst [vmem:[#allocation2] sm:$0x1] %v14
  $region1: #{tpu_custom_call.1} parent=0
    #allocation3 [shape = 'u8[512]{0}', space=vmem, size = 0x400, scoped, tag = 'output window, operand 0, single buffered']
    #allocation4 [shape = 's32[1]{0}', space=sflag, size = 0x4, scoped, tag = 'scoped memory for tpu_custom_call.1']
    %16 = vsyncpa [#allocation4], 0
    // Predicated region
    $region2: #{tpu_custom_call.1} parent=1 // pred_check
      _
    $region3: #{tpu_custom_call.1} parent=1 // pred_check_branch
      %18 = sbr.rel (0) target = $region5
    $region4: #{tpu_custom_call.1} parent=1 // pred_region
      _
    $region5: #{tpu_custom_call.1} parent=1 // pred_fallthru
      _
    // Predicated region
    $region6: #{tpu_custom_call.1} parent=1 // pred_check
      _
    $region7: #{tpu_custom_call.1} parent=1 // pred_check_branch
      %20 = sbr.rel (0) target = $region9
    $region8: #{tpu_custom_call.1} parent=1 // pred_region
      _
    $region9: #{tpu_custom_call.1} parent=1 // pred_fallthru
      _
    // Predicated region
    $region10: #{tpu_custom_call.1} parent=1 // pred_check
      _
    $region11: #{tpu_custom_call.1} parent=1 // pred_check_branch
      %22 = sbr.rel (0) target = $region13
    $region12: #{tpu_custom_call.1} parent=1 // pred_region
      _
    $region13: #{tpu_custom_call.1} parent=1 // pred_fallthru
      _
    // Predicated region
    $region14: #{tpu_custom_call.1} parent=1 // pred_check
      _
    $region15: #{tpu_custom_call.1} parent=1 // pred_check_branch
      %24 = sbr.rel (0) target = $region17
    $region16: #{tpu_custom_call.1} parent=1 // pred_region
      _
    $region17: #{tpu_custom_call.1} parent=1 // pred_fallthru
      _
    // Predicated region
    $region18: #{tpu_custom_call.1} parent=1 // pred_check
      _
    $region19: #{tpu_custom_call.1} parent=1 // pred_check_branch
      %26 = sbr.rel (0) target = $region21
    $region20: #{tpu_custom_call.1} parent=1 // pred_region
      _
    $region21: #{tpu_custom_call.1} parent=1 // pred_fallthru
      _
    // Predicated region
    $region22: #{tpu_custom_call.1} parent=1 // pred_check
      _
    $region23: #{tpu_custom_call.1} parent=1 // pred_check_branch
      %28 = sbr.rel (0) target = $region25
    $region24: #{tpu_custom_call.1} parent=1 // pred_region
      _
    $region25: #{tpu_custom_call.1} parent=1 // pred_fallthru
      _
    // Predicated region
    $region26: #{tpu_custom_call.1} parent=1 // pred_check
      _
    $region27: #{tpu_custom_call.1} parent=1 // pred_check_branch
      %30 = sbr.rel (0) target = $region29
    $region28: #{tpu_custom_call.1} parent=1 // pred_region
      _
    $region29: #{tpu_custom_call.1} parent=1 // pred_fallthru
      _
    // Predicated region
    $region30: #{tpu_custom_call.1} parent=1 // pred_check
      _
    $region31: #{tpu_custom_call.1} parent=1 // pred_check_branch
      %32 = sbr.rel (0) target = $region33
    $region32: #{tpu_custom_call.1} parent=1 // pred_region
      _
    $region33: #{tpu_custom_call.1} parent=1 // pred_fallthru
      _
    // Predicated region
    $region34: #{tpu_custom_call.1} parent=1 // pred_check
      _
    $region35: #{tpu_custom_call.1} parent=1 // pred_check_branch
      %34 = sbr.rel (0) target = $region37
    $region36: #{tpu_custom_call.1} parent=1 // pred_region
      _
    $region37: #{tpu_custom_call.1} parent=1 // pred_fallthru
      _
    %v35 = vld [vmem:[%s0] sm:$0x3]
    %v36 = vld [vmem:[%s1] sm:$0xff]
    %v37 = vld [vmem:[%s1 + $0x8] sm:$0xff]
    %39 = vset.pattern.permute.xlu0 0
    %40 = vperm.xlu0 %39, %v36
    %v41 = vpop.permute.xlu0 %40
    %44 = vset.pattern.permute.xlu0 0
    %45 = vperm.xlu0 %44, %v37
    %v46 = vpop.permute.xlu0 %45
    %v48 = vlaneseq
    %v49 = vshrl.u32 %v48, 7
    %v50 = vsub.s32 0, %v49
    %v51 = vrot.slane %v35, %v50
    %v52 = vmul.f32 %v41, %v51
    %v53 = vmul.f32 %v46, %v51
    %54 = vset.pattern.permute.xlu0 1
    %55 = vperm.xlu0 %54, %v36
    %v56 = vpop.permute.xlu0 %55
    %58 = vset.pattern.permute.xlu0 1
    %59 = vperm.xlu0 %58, %v37
    %v60 = vpop.permute.xlu0 %59
    %v62 = vlaneseq
    %v63 = vshrl.u32 %v62, 7
    %v64 = vsub.s32 1, %v63
    %v65 = vrot.slane %v35, %v64
    %v66 = vmul.f32 %v56, %v65
    %v67 = vmul.f32 %v60, %v65
    %v68 = vadd.f32 %v52, %v66
    %v69 = vadd.f32 %v53, %v67
    %v70 = vld [vmem:[%s2] sm:$0xff]
    %v71 = vld [vmem:[%s2 + $0x8] sm:$0xff]
    %73 = vset.pattern.permute.xlu0 0
    %74 = vperm.xlu0 %73, %v70
    %v75 = vpop.permute.xlu0 %74
    %78 = vset.pattern.permute.xlu0 0
    %79 = vperm.xlu0 %78, %v71
    %v80 = vpop.permute.xlu0 %79
    %v82 = vadd.f32 %v68, %v75
    %v83 = vadd.f32 %v69, %v80
    %v84 = vmax.f32 %v82, 0.0
    %v85 = vmax.f32 %v83, 0.0
    %v86 = vld [vmem:[%s3] sm:$0xff]
    %v87 = vld [vmem:[%s3 + $0x8] sm:$0xff]
    %v88 = vld [vmem:[%s4] sm:$0xff]
    %v89 = vld [vmem:[%s4 + $0x8] sm:$0xff]
    %91 = vset.pattern.permute.xlu0 0
    %92 = vperm.xlu0 %91, %v88
    %v93 = vpop.permute.xlu0 %92
    %96 = vset.pattern.permute.xlu0 0
    %97 = vperm.xlu0 %96, %v89
    %v98 = vpop.permute.xlu0 %97
    %vm100 = vcmask 130048
    %v102 = vsel %vm100, %v86, 0
    %v105 = vsel %vm100, %v87, 0
    %107 = vmatprep.subr.mxu0 0.0
    %108 = vmatpush1.msra.mxu0 %v84
    %109 = vmatprep.subr.mxu0 0.0
    %110 = vmatpush1.msra.mxu0 %v85
    %111 = vmatprep.subr.mxu0 0.0
    %112 = vmatpush1.msra.mxu0 0.0
    %113 = vmatprep.subr.mxu0 0.0
    %114 = vmatpush1.msra.mxu0 0.0
    %115 = vmatprep.subr.mxu0 0.0
    %116 = vmatpush1.msra.mxu0 0.0
    %117 = vmatprep.subr.mxu0 0.0
    %118 = vmatpush1.msra.mxu0 0.0
    %119 = vmatprep.subr.mxu0 0.0
    %120 = vmatpush1.msra.mxu0 0.0
    %121 = vmatprep.subr.mxu0 0.0
    %122 = vmatpush1.msra.mxu0 0.0
    %123 = vmatprep.subr.mxu0 0.0
    %124 = vmatpush1.msra.mxu0 0.0
    %125 = vmatprep.subr.mxu0 0.0
    %126 = vmatpush1.msra.mxu0 0.0
    %127 = vmatprep.subr.mxu0 0.0
    %128 = vmatpush1.msra.mxu0 0.0
    %129 = vmatprep.subr.mxu0 0.0
    %130 = vmatpush1.msra.mxu0 0.0
    %131 = vmatprep.subr.mxu0 0.0
    %132 = vmatpush1.msra.mxu0 0.0
    %133 = vmatprep.subr.mxu0 0.0
    %134 = vmatpush1.msra.mxu0 0.0
    %135 = vmatprep.subr.mxu0 0.0
    %136 = vmatpush1.msra.mxu0 0.0
    %137 = vmatprep.subr.mxu0 0.0
    %138 = vmatpush1.msra.mxu0 0.0
    %139 = vmatprep.subr.mxu0 0.0
    %140 = vmatpush1.msra.mxu0 0.0
    %141 = vmatprep.subr.mxu0 0.0
    %142 = vmatpush1.msra.mxu0 0.0
    %143 = vmatprep.subr.mxu0 0.0
    %144 = vmatpush1.msra.mxu0 0.0
    %145 = vmatprep.subr.mxu0 0.0
    %146 = vmatpush1.msra.mxu0 0.0
    %147 = vmatprep.subr.mxu0 0.0
    %148 = vmatpush1.msra.mxu0 0.0
    %149 = vmatprep.subr.mxu0 0.0
    %150 = vmatpush1.msra.mxu0 0.0
    %151 = vmatprep.subr.mxu0 0.0
    %152 = vmatpush1.msra.mxu0 0.0
    %153 = vmatprep.subr.mxu0 0.0
    %154 = vmatpush1.msra.mxu0 0.0
    %155 = vmatprep.subr.mxu0 0.0
    %156 = vmatpush1.msra.mxu0 0.0
    %157 = vmatprep.subr.mxu0 0.0
    %158 = vmatpush1.msra.mxu0 0.0
    %159 = vmatprep.subr.mxu0 0.0
    %160 = vmatpush1.msra.mxu0 0.0
    %161 = vmatprep.subr.mxu0 0.0
    %162 = vmatpush1.msra.mxu0 0.0
    %163 = vmatprep.subr.mxu0 0.0
    %164 = vmatpush1.msra.mxu0 0.0
    %165 = vmatprep.subr.mxu0 0.0
    %166 = vmatpush1.msra.mxu0 0.0
    %167 = vmatprep.subr.mxu0 0.0
    %168 = vmatpush1.msra.mxu0 0.0
    %169 = vmatprep.subr.mxu0 0.0
    %170 = vmatpush1.msra.mxu0 0.0
    %171 = vmatprep.mubr.f32.mxu0 0.0
    %172 = vmatmul.mubr.f32.gmra.mrb[0].mxu0 %v102
    %v173 = vpop.f32.mrb[0].mxu0
    %v174 = vadd.f32 %v93, %v173
    %v175 = vpop.f32.mrb[0].mxu0
    %176 = vmatprep.mubr.f32.mxu0 0.0
    %177 = vmatmul.mubr.f32.gmra.mrb[0].mxu0 %v105
    %v178 = vpop.f32.mrb[0].mxu0
    %v179 = vadd.f32 %v98, %v178
    %v180 = vpop.f32.mrb[0].mxu0
    %181 = vdwg.mxu0
    %v182 = vmax.f32 %v174, 0.0
    %v183 = vmax.f32 %v179, 0.0
    %v184 = vld [vmem:[%s5] sm:$0xff]
    %v185 = vld [vmem:[%s6] sm:$0xff]
    %187 = vset.pattern.permute.xlu0 0
    %188 = vperm.xlu0 %187, %v185
    %v189 = vpop.permute.xlu0 %188
    %v192 = vsel %vm100, %v184, 0
    %194 = vmatprep.subr.mxu0 0.0
    %195 = vmatpush1.msra.mxu0 %v182
    %196 = vmatprep.subr.mxu0 0.0
    %197 = vmatpush1.msra.mxu0 %v183
    %198 = vmatprep.subr.mxu0 0.0
    %199 = vmatpush1.msra.mxu0 0.0
    %200 = vmatprep.subr.mxu0 0.0
    %201 = vmatpush1.msra.mxu0 0.0
    %202 = vmatprep.subr.mxu0 0.0
    %203 = vmatpush1.msra.mxu0 0.0
    %204 = vmatprep.subr.mxu0 0.0
    %205 = vmatpush1.msra.mxu0 0.0
    %206 = vmatprep.subr.mxu0 0.0
    %207 = vmatpush1.msra.mxu0 0.0
    %208 = vmatprep.subr.mxu0 0.0
    %209 = vmatpush1.msra.mxu0 0.0
    %210 = vmatprep.subr.mxu0 0.0
    %211 = vmatpush1.msra.mxu0 0.0
    %212 = vmatprep.subr.mxu0 0.0
    %213 = vmatpush1.msra.mxu0 0.0
    %214 = vmatprep.subr.mxu0 0.0
    %215 = vmatpush1.msra.mxu0 0.0
    %216 = vmatprep.subr.mxu0 0.0
    %217 = vmatpush1.msra.mxu0 0.0
    %218 = vmatprep.subr.mxu0 0.0
    %219 = vmatpush1.msra.mxu0 0.0
    %220 = vmatprep.subr.mxu0 0.0
    %221 = vmatpush1.msra.mxu0 0.0
    %222 = vmatprep.subr.mxu0 0.0
    %223 = vmatpush1.msra.mxu0 0.0
    %224 = vmatprep.subr.mxu0 0.0
    %225 = vmatpush1.msra.mxu0 0.0
    %226 = vmatprep.subr.mxu0 0.0
    %227 = vmatpush1.msra.mxu0 0.0
    %228 = vmatprep.subr.mxu0 0.0
    %229 = vmatpush1.msra.mxu0 0.0
    %230 = vmatprep.subr.mxu0 0.0
    %231 = vmatpush1.msra.mxu0 0.0
    %232 = vmatprep.subr.mxu0 0.0
    %233 = vmatpush1.msra.mxu0 0.0
    %234 = vmatprep.subr.mxu0 0.0
    %235 = vmatpush1.msra.mxu0 0.0
    %236 = vmatprep.subr.mxu0 0.0
    %237 = vmatpush1.msra.mxu0 0.0
    %238 = vmatprep.subr.mxu0 0.0
    %239 = vmatpush1.msra.mxu0 0.0
    %240 = vmatprep.subr.mxu0 0.0
    %241 = vmatpush1.msra.mxu0 0.0
    %242 = vmatprep.subr.mxu0 0.0
    %243 = vmatpush1.msra.mxu0 0.0
    %244 = vmatprep.subr.mxu0 0.0
    %245 = vmatpush1.msra.mxu0 0.0
    %246 = vmatprep.subr.mxu0 0.0
    %247 = vmatpush1.msra.mxu0 0.0
    %248 = vmatprep.subr.mxu0 0.0
    %249 = vmatpush1.msra.mxu0 0.0
    %250 = vmatprep.subr.mxu0 0.0
    %251 = vmatpush1.msra.mxu0 0.0
    %252 = vmatprep.subr.mxu0 0.0
    %253 = vmatpush1.msra.mxu0 0.0
    %254 = vmatprep.subr.mxu0 0.0
    %255 = vmatpush1.msra.mxu0 0.0
    %256 = vmatprep.subr.mxu0 0.0
    %257 = vmatpush1.msra.mxu0 0.0
    %258 = vmatprep.mubr.f32.mxu0 0.0
    %259 = vmatmul.mubr.f32.gmra.mrb[0].mxu0 %v192
    %v260 = vpop.f32.mrb[0].mxu0
    %v261 = vadd.f32 %v189, %v260
    %v262 = vpop.f32.mrb[0].mxu0
    %263 = vdwg.mxu0
    %v264 = vmax.f32 %v261, 0.0
    %v265 = vld [vmem:[%s7] sm:$0xff]
    %267 = vset.pattern.permute.xlu0 0
    %268 = vperm.xlu0 %267, %v265
    %v269 = vpop.permute.xlu0 %268
    %v271 = vmul.f32 %v269, %v264
    %v272 = vrot.slane %v271, 4
    %v273 = vadd.f32 %v271, %v272
    %v274 = vrot.slane %v273, 2
    %v275 = vadd.f32 %v273, %v274
    %v276 = vrot.slane %v275, 1
    %v277 = vadd.f32 %v275, %v276
    %v278 = vld [vmem:[#allocation2] sm:$0x1]
    %280 = vset.pattern.permute.xlu0 0
    %281 = vperm.xlu0 %280, %v278
    %v282 = vpop.permute.xlu0 %281
    %v284 = vlaneseq
    %v285 = vshrl.u32 %v284, 7
    %v286 = vsub.s32 0, %v285
    %v287 = vrot.slane %v282, %v286
    %v288 = vadd.f32 %v277, %v287
    %v289 = vxor.u32 %v288, 2147483648
    %v290 = vmul.f32 %v289, 1.442695
    %v291 = vpow.pop %v290
    %v292 = vadd.f32 %v291, 1.0
    %v293 = vrcp.pop %v292
    %v294 = vmul.f32 1.0, %v293
    %295 = vst [vmem:[#allocation3] sm:$0x1] %v294
    // Predicated region
    $region38: #{tpu_custom_call.1} parent=1 // pred_check
      _
    $region39: #{tpu_custom_call.1} parent=1 // pred_check_branch
      %297 = sbr.rel (0) target = $region41
    $region40: #{tpu_custom_call.1} parent=1 // pred_region
      %s299 = ssub.s32 16, 16
      %300 = vsyncadd [#allocation4], %s299
      %s302 = sshll.u32 [#allocation3], 4
      %s303 = int_to_ptr.vmem [resolvable:$true] %s302
      %305 = dma.vmem_to_hbm [thread:$0]  %s303, 16, %s9, [#allocation4]
    $region41: #{tpu_custom_call.1} parent=1 // pred_fallthru
      _
    // Predicated region
    $region42: #{tpu_custom_call.1} parent=1 // pred_check
      _
    $region43: #{tpu_custom_call.1} parent=1 // pred_check_branch
      %307 = sbr.rel (0) target = $region45
    $region44: #{tpu_custom_call.1} parent=1 // pred_region
      %308 = dma.done [#allocation4], 16
    $region45: #{tpu_custom_call.1} parent=1 // pred_fallthru
      _
    %309 = vsyncpa [#allocation4], 1

</llo_original>
